<compile_context>
chip_gen: v7x
topology: tpu7x:2x2x1
jax: 0.10.0
libtpu: 0.0.40
codegen_flags: <defaults>
</compile_context>

<pallas_src>
import math

import jax
import jax.numpy as jnp
import numpy as np
from jax import lax
from jax.experimental import pallas as pl
from jax.experimental.pallas import tpu as pltpu

# CDF polynomial coefficients (non-trainable buffers in the PyTorch module ->
# compile-time constants here).
_B = (0.31938153, -0.356563782, 1.781477937, -1.821255978, 1.330274429)
_T_COEF = 0.2316419
_INV_SQRT_2PI = 1.0 / math.sqrt(2.0 * math.pi)


def _round_up(a: int, b: int) -> int:
    return (a + b - 1) // b * b


def _uniformer_kernel(scale_ref, x_ref, o_ref):
    """Processes a (TM, D) block of rows.

    NOTE: the block MUST span the full feature dimension D: both the per-row
    reduction and the unbiased (D-1) divisor assume the whole row is present.
    Rows are fully independent, so a partial (masked) final row block is safe.
    """
    x = x_ref[...].astype(jnp.float32)
    d = x.shape[1]

    # Two-pass row statistics: mean first, then unbiased variance of the
    # centered data.  The second lane reduction rides the XLU slot (free in a
    # mem-bound kernel) and avoids the cancellation failure of E[x^2]-E[x]^2.
    mean = jnp.sum(x, axis=1, keepdims=True) * jnp.float32(1.0 / d)
    xc = x - mean
    var = jnp.sum(xc * xc, axis=1, keepdims=True) * jnp.float32(1.0 / (d - 1))
    inv_std = lax.rsqrt(var)                      # (TM, 1) rsqrt on EUP
    xn = xc * inv_std                             # one mul/elem instead of a divide

    # exp(-x^2/2); the 1/sqrt(2*pi) factor is folded into the coefficients.
    pdf = jnp.exp(jnp.float32(-0.5) * (xn * xn))

    # t = 1 / (1 + 0.2316419 * |x|).  Exact divide: the approximate EUP
    # reciprocal was the source of the ~1e-2 accuracy failure.
    t = jnp.float32(1.0) / (jnp.float32(1.0) + jnp.float32(_T_COEF) * jnp.abs(xn))

    # Fold 2*scale/sqrt(2*pi) into the Horner coefficients (scalar work only).
    scale = scale_ref[0, 0]
    f = jnp.float32(2.0 * _INV_SQRT_2PI) * scale
    c1 = jnp.float32(_B[0]) * f
    c2 = jnp.float32(_B[1]) * f
    c3 = jnp.float32(_B[2]) * f
    c4 = jnp.float32(_B[3]) * f
    c5 = jnp.float32(_B[4]) * f
    poly = t * (c1 + t * (c2 + t * (c3 + t * (c4 + t * c5))))
    g = pdf * poly                                # == 2*scale*phi(x)*sum_k b_k t^k

    # out = (2*cdf - 1) * scale, with cdf = 1 - pdf*poly for x >= 0 and
    # cdf = pdf*poly for x < 0.  (xc has the same sign as xn.)
    o_ref[...] = jnp.where(xc < jnp.float32(0.0), g - scale, scale - g).astype(o_ref.dtype)


def _choose_row_tile(n: int, d: int, in_bytes: int, out_bytes: int,
                     requested: int, vmem_budget_bytes: int, align: int) -> int:
    # Per-row VMEM cost: double-buffered input + output pipeline blocks plus
    # ~4 full-tile f32 temporaries live inside the kernel body (x cast, xc,
    # xn, t/poly).  Counting the temporaries keeps the tile safe on v7x's
    # 64 MiB physical VMEM while still allowing large (1-4 MiB) blocks.
    bytes_per_row = 2 * d * (in_bytes + out_bytes) + 4 * d * 4
    cap = max(align, (vmem_budget_bytes // max(bytes_per_row, 1)) // align * align)
    tm = min(requested, cap, _round_up(n, align))
    tm = max(align, tm - tm % align)
    # Guarantee >= 2 grid steps whenever the row count allows it, so the
    # "parallel" row axis actually feeds both v7x TensorCores.  On single-TC
    # v5e/v6e this adds at most one ~0.35us grid step -> negligible.
    if pl.cdiv(n, tm) < 2:
        tm_half = max(align, _round_up(pl.cdiv(n, 2), align))
        if pl.cdiv(n, tm_half) >= 2:
            tm = tm_half
    return tm


def normal_dist_uniformer(x: jax.Array, output_scale,
                          *, row_tile: int = 4096,
                          vmem_budget_bytes: int = 16 * 2**20) -> jax.Array:
    """x: [N, D] float array.  output_scale: scalar parameter."""
    assert x.ndim == 2, f"Wrong shape: {x.shape}"
    n, d = x.shape
    assert d >= 2, "need at least two features per row for an unbiased std"

    out_dtype = x.dtype
    in_bytes = jnp.dtype(x.dtype).itemsize
    out_bytes = jnp.dtype(out_dtype).itemsize
    # f32 blocks need sublane multiples of 8; sub-32-bit I/O packs 2 rows per
    # sublane, so use 16 there.
    align = 16 if min(in_bytes, out_bytes) < 4 else 8

    tm = _choose_row_tile(n, d, in_bytes, out_bytes, row_tile,
                          vmem_budget_bytes, align)

    # No host-side padding / slicing: run a partial final block and let Pallas
    # mask the out-of-bounds rows (rows are independent, so garbage rows in the
    # padded region cannot contaminate valid rows).
    grid = (pl.cdiv(n, tm),)

    scale_arr = jnp.asarray(output_scale, jnp.float32).reshape(1, 1)

    # Explicit VMEM limit: pipeline buffers + in-kernel temporaries + headroom,
    # bounded so it is valid on v5e (16 MiB default scoped) and v7x (64 MiB
    # physical / 32 MiB default scoped, with headroom for Mosaic scratch).
    bytes_per_row = 2 * d * (in_bytes + out_bytes) + 4 * d * 4
    needed = tm * bytes_per_row + (4 << 20)
    vmem_limit = int(min(max(needed, 16 * 2**20), 40 * 2**20))

    out = pl.pallas_call(
        _uniformer_kernel,
        out_shape=jax.ShapeDtypeStruct((n, d), out_dtype),
        grid_spec=pltpu.PrefetchScalarGridSpec(
            num_scalar_prefetch=0,
            grid=grid,
            in_specs=[
                pl.BlockSpec(memory_space=pltpu.SMEM),      # output_scale (1,1)
                pl.BlockSpec((tm, d), lambda i: (i, 0)),    # x rows (full D)
            ],
            out_specs=pl.BlockSpec((tm, d), lambda i: (i, 0)),
        ),
        compiler_params=pltpu.CompilerParams(
            dimension_semantics=("parallel",),
            vmem_limit_bytes=vmem_limit),
    )(scale_arr, x)
    return out


def _reference(x, scale: float) -> np.ndarray:
    """Pure-numpy reference mirroring the PyTorch forward (float64)."""
    x = np.asarray(x, np.float64)
    mean = x.mean(axis=1, keepdims=True)
    std = x.std(axis=1, keepdims=True, ddof=1)  # unbiased, like torch
    xn = (x - mean) / std
    pdf = np.exp(-0.5 * xn ** 2) / np.sqrt(2 * np.pi)
    t = 1.0 / (1.0 + _T_COEF * np.abs(xn))
    poly = sum(b * t ** (k + 1) for k, b in enumerate(_B))
    cdf = 1.0 - pdf * poly
    cdf = np.where(xn < 0, 1.0 - cdf, cdf)
    return ((cdf * 2.0 - 1.0) * scale).astype(np.float32)


if __name__ == "__main__":
    key = jax.random.PRNGKey(0)
    k1, k2, k3 = jax.random.split(key, 3)

    # Deterministic parameter init (matches nn.Parameter(torch.tensor(sqrt(3)))).
    output_scale = jnp.float32(np.sqrt(3.0))

    # Everything is full-precision f32 now (exact divide / rsqrt / exp), so a
    # tight tolerance against the float64 reference is fine.
    rtol, atol = 1e-3, 1e-3

    # Case 1: small aligned rows (split into 2 grid steps).
    x1 = jax.random.normal(k1, (16, 128), dtype=jnp.float32)
    out1 = jax.block_until_ready(normal_dist_uniformer(x1, output_scale))
    np.testing.assert_allclose(np.asarray(out1), _reference(x1, float(output_scale)),
                               rtol=rtol, atol=atol)

    # Case 2: non-tile-multiple rows (exercises the masked partial final block,
    # no host-side pad/slice copies) with shifted / scaled data.
    x2 = jax.random.normal(k2, (13, 256), dtype=jnp.float32) * 2.0 + 0.5
    out2 = jax.block_until_ready(normal_dist_uniformer(x2, output_scale))
    np.testing.assert_allclose(np.asarray(out2), _reference(x2, float(output_scale)),
                               rtol=rtol, atol=atol)

    # Case 3: |mean| >> std (exercises the two-pass variance robustness).
    x3 = jax.random.normal(k3, (16, 128), dtype=jnp.float32) * 0.5 + 10.0
    out3 = jax.block_until_ready(normal_dist_uniformer(x3, output_scale))
    np.testing.assert_allclose(np.asarray(out3), _reference(x3, float(output_scale)),
                               rtol=rtol, atol=atol)

    print("KERNEL_OK")
</pallas_src>

<mosaic_0001>
module attributes {stable_mosaic.version = 11 : i64} {
  func.func @_uniformer_kernel(%arg0: i32, %arg1: memref<1x1xf32, #tpu.memory_space<smem>>, %arg2: memref<8x128xf32, #tpu.memory_space<vmem>>, %arg3: memref<8x128xf32, #tpu.memory_space<vmem>>) attributes {dimension_semantics = [#tpu.dimension_semantics<parallel>], iteration_bounds = array<i64: 2>, scalar_prefetch = 0 : i64, scratch_operands = 0 : i64, tpu.core_type = #tpu.core_type<tc>, window_params = [{transform_indices = @transform_0, window_bounds = array<i64: 1, 1>}, {transform_indices = @transform_1, window_bounds = array<i64: 8, 128>}, {transform_indices = @transform_2, window_bounds = array<i64: 8, 128>}]} {
    %c0 = arith.constant 0 : index
    %c0_0 = arith.constant 0 : index
    %0 = vector.load %arg2[%c0, %c0_0] : memref<8x128xf32, #tpu.memory_space<vmem>>, vector<8x128xf32>
    %cst = arith.constant dense<0.000000e+00> : vector<8xf32>
    %1 = vector.multi_reduction <add>, %0, %cst [1] : vector<8x128xf32> to vector<8xf32>
    %2 = vector.shape_cast %1 : vector<8xf32> to vector<8x1xf32>
    %cst_1 = arith.constant 7.812500e-03 : f32
    %3 = vector.broadcast %cst_1 : f32 to vector<8x1xf32>
    %4 = arith.mulf %2, %3 : vector<8x1xf32>
    %5 = vector.broadcast %4 : vector<8x1xf32> to vector<8x128xf32>
    %6 = arith.subf %0, %5 : vector<8x128xf32>
    %7 = arith.mulf %6, %6 : vector<8x128xf32>
    %cst_2 = arith.constant dense<0.000000e+00> : vector<8xf32>
    %8 = vector.multi_reduction <add>, %7, %cst_2 [1] : vector<8x128xf32> to vector<8xf32>
    %9 = vector.shape_cast %8 : vector<8xf32> to vector<8x1xf32>
    %cst_3 = arith.constant 0.00787401571 : f32
    %10 = vector.broadcast %cst_3 : f32 to vector<8x1xf32>
    %11 = arith.mulf %9, %10 : vector<8x1xf32>
    %12 = math.rsqrt %11 : vector<8x1xf32>
    %13 = vector.broadcast %12 : vector<8x1xf32> to vector<8x128xf32>
    %14 = arith.mulf %6, %13 : vector<8x128xf32>
    %15 = arith.mulf %14, %14 : vector<8x128xf32>
    %cst_4 = arith.constant -5.000000e-01 : f32
    %16 = vector.broadcast %cst_4 : f32 to vector<8x128xf32>
    %17 = arith.mulf %16, %15 : vector<8x128xf32>
    %18 = math.exp %17 : vector<8x128xf32>
    %19 = math.absf %14 : vector<8x128xf32>
    %cst_5 = arith.constant 0.231641904 : f32
    %20 = vector.broadcast %cst_5 : f32 to vector<8x128xf32>
    %21 = arith.mulf %20, %19 : vector<8x128xf32>
    %cst_6 = arith.constant 1.000000e+00 : f32
    %22 = vector.broadcast %cst_6 : f32 to vector<8x128xf32>
    %23 = arith.addf %22, %21 : vector<8x128xf32>
    %cst_7 = arith.constant 1.000000e+00 : f32
    %24 = vector.broadcast %cst_7 : f32 to vector<8x128xf32>
    %25 = arith.divf %24, %23 : vector<8x128xf32>
    %c0_8 = arith.constant 0 : index
    %c0_9 = arith.constant 0 : index
    %26 = memref.load %arg1[%c0_8, %c0_9] : memref<1x1xf32, #tpu.memory_space<smem>>
    %cst_10 = arith.constant 0.797884583 : f32
    %27 = arith.mulf %cst_10, %26 : f32
    %cst_11 = arith.constant 0.319381535 : f32
    %28 = arith.mulf %cst_11, %27 : f32
    %cst_12 = arith.constant -0.356563777 : f32
    %29 = arith.mulf %cst_12, %27 : f32
    %cst_13 = arith.constant 1.78147793 : f32
    %30 = arith.mulf %cst_13, %27 : f32
    %cst_14 = arith.constant -1.82125592 : f32
    %31 = arith.mulf %cst_14, %27 : f32
    %cst_15 = arith.constant 1.33027446 : f32
    %32 = arith.mulf %cst_15, %27 : f32
    %33 = vector.broadcast %32 : f32 to vector<8x128xf32>
    %34 = arith.mulf %25, %33 : vector<8x128xf32>
    %35 = vector.broadcast %31 : f32 to vector<8x128xf32>
    %36 = arith.addf %35, %34 : vector<8x128xf32>
    %37 = arith.mulf %25, %36 : vector<8x128xf32>
    %38 = vector.broadcast %30 : f32 to vector<8x128xf32>
    %39 = arith.addf %38, %37 : vector<8x128xf32>
    %40 = arith.mulf %25, %39 : vector<8x128xf32>
    %41 = vector.broadcast %29 : f32 to vector<8x128xf32>
    %42 = arith.addf %41, %40 : vector<8x128xf32>
    %43 = arith.mulf %25, %42 : vector<8x128xf32>
    %44 = vector.broadcast %28 : f32 to vector<8x128xf32>
    %45 = arith.addf %44, %43 : vector<8x128xf32>
    %46 = arith.mulf %25, %45 : vector<8x128xf32>
    %47 = arith.mulf %18, %46 : vector<8x128xf32>
    %cst_16 = arith.constant 0.000000e+00 : f32
    %48 = vector.broadcast %cst_16 : f32 to vector<8x128xf32>
    %49 = arith.cmpf olt, %6, %48 : vector<8x128xf32>
    %50 = vector.broadcast %26 : f32 to vector<8x128xf32>
    %51 = arith.subf %47, %50 : vector<8x128xf32>
    %52 = vector.broadcast %26 : f32 to vector<8x128xf32>
    %53 = arith.subf %52, %47 : vector<8x128xf32>
    %54 = arith.select %49, %51, %53 : vector<8x128xi1>, vector<8x128xf32>
    %c0_17 = arith.constant 0 : index
    %c0_18 = arith.constant 0 : index
    %55 = vector.load %arg3[%c0_17, %c0_18] : memref<8x128xf32, #tpu.memory_space<vmem>>, vector<8x128xf32>
    tpu.vector_store %arg3[%c0_17, %c0_18], %54 {strides = array<i32>} : memref<8x128xf32, #tpu.memory_space<vmem>>, vector<8x128xf32>,
    return
  }
  func.func @transform_0(%arg0: i32) -> (i32, i32) {
    %c0_i32 = arith.constant 0 : i32
    %c0_i32_0 = arith.constant 0 : i32
    %c0_i32_1 = arith.constant 0 : i32
    return %c0_i32, %c0_i32_0 : i32, i32
  }
  func.func @transform_1(%arg0: i32) -> (i32, i32) {
    %c0_i32 = arith.constant 0 : i32
    %c0_i32_0 = arith.constant 0 : i32
    return %arg0, %c0_i32 : i32, i32
  }
  func.func @transform_2(%arg0: i32) -> (i32, i32) {
    %c0_i32 = arith.constant 0 : i32
    %c0_i32_0 = arith.constant 0 : i32
    return %arg0, %c0_i32 : i32, i32
  }
}

</mosaic_0001>

<llo_original>
// kernel: tpu_custom_call.1
$region0: #{tpu_custom_call.1}
  #allocation0 [shape = 'u32[]', space=smem, size = 0x4, offset = 0x4, fixed_abs, tag = 'smem constant byte address 0x4 - core index']
  #allocation1 [shape = 'u32[144,128]{1,0:T(1,128)}', space=vmem, size = 0x12000, scoped, tag = 'internal scratch']
  #allocation2 [shape = 'f32[1,1]{1,0:T(1,128)S(6)}', space=smem, size = 0x200, scoped, tag = 'scoped memory for tpu_custom_call.1']
  %s0 = inlined_call_operand.<no memory space> [shape: f32[1,1], index: 0, kind: input, shape index: {}]
  %s1 = inlined_call_operand.hbm [shape: f32[16,128], index: 1, kind: input, shape index: {}]
  %s2 = inlined_call_operand.hbm [shape: f32[16,128], index: 2, kind: output, shape index: {}]
  %s3 = sld [smem:[#allocation0]]
  $region45: #{tpu_custom_call.1} parent=0
    _
  %s5 = ssub.s32 1, %s3
  %s6 = scalar_select 0, %s5, %s3
  %7 = sst [smem:[#allocation2]] %s0
  $region1: #{tpu_custom_call.1} parent=0
    #allocation3 [shape = 'u8[8192]{0}', space=vmem, size = 0x2000, scoped, tag = 'input window, operand 1']
    #allocation4 [shape = 's32[2]{0}', space=sflag, size = 0x8, scoped, tag = 'scoped memory for tpu_custom_call.1']
    #allocation5 [shape = 's32[2]{0}', space=sflag, size = 0x8, scoped, tag = 'scoped memory for tpu_custom_call.1']
    #allocation6 [shape = 'u8[8192]{0}', space=vmem, size = 0x2000, scoped, tag = 'output window, operand 0']
    %8 = vsyncpa [#allocation4], 0
    %s9 = scalar_lea.sflag [#allocation4], 1
    %10 = vsyncpa %s9, 0
    %11 = vsyncpa [#allocation5], 0
    %s12 = scalar_lea.sflag [#allocation5], 1
    %13 = vsyncpa %s12, 0
    loop: start=0, step=1, limit=4
    $region2: #{tpu_custom_call.1} parent=1 // loop_pre_header
      _
    $region3: #{tpu_custom_call.1} parent=1 // loop_header
      %s15 = sphi 0, %s19
      %p16 = scmp.ge.s32.totalorder %s15, 4
      %s23 = sphi 0, %s23
      %s25 = sphi 0, %s23
      %s26 = sphi 0, %s25
      %s40 = sphi 0, %s26
      %s46 = sphi 0, %s48
      %s49 = sphi 0, %s46
      %s50 = sphi 0, %s49
      %s66 = sphi 0, %s50
      %s72 = sphi 0, %s74
      %s75 = sphi 0, %s72
      %s76 = sphi 0, %s75
      %s92 = sphi 0, %s76
    $region4: #{tpu_custom_call.1} parent=1 // loop_header_branch
      %18 = sbr.rel (%p16) target = $region8
    $region5: #{tpu_custom_call.1} parent=1 // loop_body
      %s20 = ssub.s32 %s15, 1
      %s21 = ssub.s32 %s15, 2
      %s22 = sadd.s32 %s15, 1
      %s24 = sadd.s32 %s23, 1
      %p27 = scmp.eq.s32.totalorder %s15, 1
      %p28 = scmp.ne.s32.totalorder %s23, %s25
      %p29 = scmp.eq.s32.totalorder %s15, 0
      %p30 = por %p28, %p29
      %p31 = scmp.ne.s32.totalorder %s23, %s25
      %p32 = scmp.eq.s32.totalorder %s20, 1
      %p33 = por %p31, %p32
      %p34 = scmp.ne.s32.totalorder %s25, %s26
      %p35 = scmp.eq.s32.totalorder %s20, 0
      %p36 = por %p34, %p35
      %p37 = scmp.ne.s32.totalorder %s25, %s26
      %p38 = scmp.eq.s32.totalorder %s21, 1
      %p39 = por %p37, %p38
      %p41 = scmp.ne.s32.totalorder %s26, %s40
      %p42 = scmp.eq.s32.totalorder %s21, 0
      %p43 = por %p41, %p42
      %s44 = ssub.s32 %s15, %s22
      %p45 = scmp.eq.s32.totalorder %s44, 0
      %s47 = sadd.s32 %s46, 1
      %s48 = scalar_select %p45, %s46, %s47
      %p51 = pneg %p45
      %p52 = scmp.eq.s32.totalorder %s15, 1
      %p53 = por %p51, %p52
      %p54 = scmp.ne.s32.totalorder %s46, %s49
      %p55 = scmp.eq.s32.totalorder %s15, 0
      %p56 = por %p54, %p55
      %p57 = scmp.ne.s32.totalorder %s46, %s49
      %p58 = scmp.eq.s32.totalorder %s20, 1
      %p59 = por %p57, %p58
      %p60 = scmp.ne.s32.totalorder %s49, %s50
      %p61 = scmp.eq.s32.totalorder %s20, 0
      %p62 = por %p60, %p61
      %p63 = scmp.ne.s32.totalorder %s49, %s50
      %p64 = scmp.eq.s32.totalorder %s21, 1
      %p65 = por %p63, %p64
      %p67 = scmp.ne.s32.totalorder %s50, %s66
      %p68 = scmp.eq.s32.totalorder %s21, 0
      %p69 = por %p67, %p68
      %s70 = ssub.s32 %s15, %s22
      %p71 = scmp.eq.s32.totalorder %s70, 0
      %s73 = sadd.s32 %s72, 1
      %s74 = scalar_select %p71, %s72, %s73
      %p77 = pneg %p71
      %p78 = scmp.eq.s32.totalorder %s15, 1
      %p79 = por %p77, %p78
      %p80 = scmp.ne.s32.totalorder %s72, %s75
      %p81 = scmp.eq.s32.totalorder %s15, 0
      %p82 = por %p80, %p81
      %p83 = scmp.ne.s32.totalorder %s72, %s75
      %p84 = scmp.eq.s32.totalorder %s20, 1
      %p85 = por %p83, %p84
      %p86 = scmp.ne.s32.totalorder %s75, %s76
      %p87 = scmp.eq.s32.totalorder %s20, 0
      %p88 = por %p86, %p87
      %p89 = scmp.ne.s32.totalorder %s75, %s76
      %p90 = scmp.eq.s32.totalorder %s21, 1
      %p91 = por %p89, %p90
      %p93 = scmp.ne.s32.totalorder %s76, %s92
      %p94 = scmp.eq.s32.totalorder %s21, 0
      %p95 = por %p93, %p94
      %p96 = scmp.le.s32.totalorder 1, %s15
      %p97 = scmp.lt.s32.totalorder %s15, 3
      %p98 = pnand %p96, %p97
      %p99 = pneg %p98
      // Predicated region
      $region9: #{tpu_custom_call.1} parent=5 // pred_check
        _
      $region10: #{tpu_custom_call.1} parent=5 // pred_check_branch
        %101 = sbr.rel (%p98) target = $region12
      $region11: #{tpu_custom_call.1} parent=5 // pred_region
        %s102 = ssub.s32 %s15, 1
        // Predicated region
        $region13: #{tpu_custom_call.1} parent=11 // pred_check
          %p103 = pneg %p36
        $region14: #{tpu_custom_call.1} parent=11 // pred_check_branch
          %105 = sbr.rel (%p103) target = $region16
        $region15: #{tpu_custom_call.1} parent=11 // pred_region
          _
        $region16: #{tpu_custom_call.1} parent=11 // pred_fallthru
          _
      $region12: #{tpu_custom_call.1} parent=5 // pred_fallthru
        _
      %p106 = scmp.lt.s32.totalorder %s15, 2
      // Predicated region
      $region17: #{tpu_custom_call.1} parent=5 // pred_check
        %p107 = pneg %p106
      $region18: #{tpu_custom_call.1} parent=5 // pred_check_branch
        %109 = sbr.rel (%p107) target = $region20
      $region19: #{tpu_custom_call.1} parent=5 // pred_region
        // Predicated region
        $region21: #{tpu_custom_call.1} parent=19 // pred_check
          %p110 = pneg %p56
        $region22: #{tpu_custom_call.1} parent=19 // pred_check_branch
          %112 = sbr.rel (%p110) target = $region24
        $region23: #{tpu_custom_call.1} parent=19 // pred_region
          %s113 = sand.u32 %s46, 1
          %s114 = scalar_lea.sflag [#allocation4], %s113
          %s115 = sand.u32 %s46, 1
          %s116 = smul.addr %s115, 8
          %s117 = scalar_lea.vmem [#allocation3], %s116
          %s119 = ssub.s32 128, 128
          %120 = vsyncadd %s114, %s119
          %s121 = smul.addr %s15, 128
          %s122 = scalar_lea.hbm %s1, %s121
          %s124 = sshll.u32 %s117, 4
          %s125 = int_to_ptr.vmem [resolvable:$true] %s124
          %127 = dma.hbm_to_vmem [thread:$0]  %s122, 128, %s125, %s114
        $region24: #{tpu_custom_call.1} parent=19 // pred_fallthru
          _
      $region20: #{tpu_custom_call.1} parent=5 // pred_fallthru
        _
      %p128 = scmp.le.s32.totalorder 1, %s15
      %p129 = scmp.lt.s32.totalorder %s15, 3
      %p130 = pnand %p128, %p129
      %p131 = pneg %p130
      // Predicated region
      $region25: #{tpu_custom_call.1} parent=5 // pred_check
        _
      $region26: #{tpu_custom_call.1} parent=5 // pred_check_branch
        %133 = sbr.rel (%p130) target = $region28
      $region27: #{tpu_custom_call.1} parent=5 // pred_region
        %s134 = ssub.s32 %s15, 1
        %s135 = sand.u32 %s49, 1
        %s136 = scalar_lea.sflag [#allocation4], %s135
        %s137 = sand.u32 %s49, 1
        %s138 = smul.addr %s137, 8
        %s139 = scalar_lea.vmem [#allocation3], %s138
        // Predicated region
        $region29: #{tpu_custom_call.1} parent=27 // pred_check
          %p140 = pneg %p62
        $region30: #{tpu_custom_call.1} parent=27 // pred_check_branch
          %142 = sbr.rel (%p140) target = $region32
        $region31: #{tpu_custom_call.1} parent=27 // pred_region
          %143 = dma.done %s136, 128
        $region32: #{tpu_custom_call.1} parent=27 // pred_fallthru
          _
        %p144 = pneg %p36
        %p145 = pneg %p33
        %s146 = sand.u32 %s49, 1
        %s147 = scalar_lea.sflag [#allocation4], %s146
        %s148 = sand.u32 %s49, 1
        %s149 = smul.addr %s148, 8
        %s150 = scalar_lea.vmem [#allocation3], %s149
        %p151 = pneg %p62
        %p152 = pneg %p59
        %p153 = pneg %p88
        %p154 = pneg %p85
        %s155 = sand.u32 %s75, 1
        %s156 = scalar_lea.sflag [#allocation5], %s155
        %s157 = sand.u32 %s75, 1
        %s158 = smul.addr %s157, 8
        %s159 = scalar_lea.vmem [#allocation6], %s158
        %v160 = vld [vmem:[%s139] sm:$0xff]
        %161 = vadd.xlane.f32.xlu0 %v160
        %v162 = vpop.xlane.xlu0 %161
        %v163 = vmul.f32 %v162, 0.0078125
        %v164 = vsub.f32 %v160, %v163
        %v165 = vmul.f32 %v164, %v164
        %166 = vadd.xlane.f32.xlu0 %v165
        %v167 = vpop.xlane.xlu0 %166
        %v168 = vmul.f32 %v167, 0.007874016
        %v169 = vrsqrt.pop %v168
        %v170 = vmul.f32 %v164, %v169
        %v171 = vmul.f32 %v170, %v170
        %v172 = vmul.f32 %v171, -0.5
        %v173 = vmul.f32 %v172, 1.442695
        %v174 = vpow.pop %v173
        %v175 = vand.u32 2147483647, %v170
        %v176 = vmul.f32 %v175, 0.2316419
        %v177 = vadd.f32 %v176, 1.0
        %v178 = vrcp.pop %v177
        %v179 = vmul.f32 1.0, %v178
        %s180 = sld [smem:[#allocation2]]
        %s181 = smul.f32 %s180, 0.7978846
        %s182 = smul.f32 %s181, 0.31938154
        %s183 = smul.f32 %s181, -0.35656378
        %s184 = smul.f32 %s181, 1.7814779
        %s185 = smul.f32 %s181, -1.8212559
        %s186 = smul.f32 %s181, 1.3302745
        %v187 = vstv %s186
        %v188 = vmul.f32 %v179, %v187
        %v189 = vstv %s185
        %v190 = vadd.f32 %v189, %v188
        %v191 = vmul.f32 %v179, %v190
        %v192 = vstv %s184
        %v193 = vadd.f32 %v192, %v191
        %v194 = vmul.f32 %v179, %v193
        %v195 = vstv %s183
        %v196 = vadd.f32 %v195, %v194
        %v197 = vmul.f32 %v179, %v196
        %v198 = vstv %s182
        %v199 = vadd.f32 %v198, %v197
        %v200 = vmul.f32 %v179, %v199
        %v201 = vmul.f32 %v174, %v200
        %vm202 = vcmp.lt.f32.partialorder %v164, 0.0
        %v203 = vstv %s180
        %v204 = vsub.f32 %v201, %v203
        %v205 = vsub.f32 %v203, %v201
        %v206 = vsel %vm202, %v204, %v205
        %207 = vst [vmem:[%s159] sm:$0xff] %v206
        %s208 = sand.u32 %s75, 1
        %s209 = scalar_lea.sflag [#allocation5], %s208
        %s210 = sand.u32 %s75, 1
        %s211 = smul.addr %s210, 8
        %s212 = scalar_lea.vmem [#allocation6], %s211
        // Predicated region
        $region33: #{tpu_custom_call.1} parent=27 // pred_check
          %p213 = pneg %p85
        $region34: #{tpu_custom_call.1} parent=27 // pred_check_branch
          %215 = sbr.rel (%p213) target = $region36
        $region35: #{tpu_custom_call.1} parent=27 // pred_region
          %s217 = ssub.s32 128, 128
          %218 = vsyncadd %s209, %s217
          %s219 = smul.addr %s20, 128
          %s220 = scalar_lea.hbm %s2, %s219
          %s222 = sshll.u32 %s212, 4
          %s223 = int_to_ptr.vmem [resolvable:$true] %s222
          %225 = dma.vmem_to_hbm [thread:$0]  %s223, 128, %s220, %s209
        $region36: #{tpu_custom_call.1} parent=27 // pred_fallthru
          _
      $region28: #{tpu_custom_call.1} parent=5 // pred_fallthru
        _
      %p226 = scmp.le.s32.totalorder 2, %s15
      // Predicated region
      $region37: #{tpu_custom_call.1} parent=5 // pred_check
        %p227 = pneg %p226
      $region38: #{tpu_custom_call.1} parent=5 // pred_check_branch
        %229 = sbr.rel (%p227) target = $region40
      $region39: #{tpu_custom_call.1} parent=5 // pred_region
        %s230 = ssub.s32 %s15, 2
        // Predicated region
        $region41: #{tpu_custom_call.1} parent=39 // pred_check
          %p231 = pneg %p91
        $region42: #{tpu_custom_call.1} parent=39 // pred_check_branch
          %233 = sbr.rel (%p231) target = $region44
        $region43: #{tpu_custom_call.1} parent=39 // pred_region
          %s234 = sand.u32 %s76, 1
          %s235 = scalar_lea.sflag [#allocation5], %s234
          %s236 = sand.u32 %s76, 1
          %s237 = smul.addr %s236, 8
          %s238 = scalar_lea.vmem [#allocation6], %s237
          %239 = dma.done %s235, 128
        $region44: #{tpu_custom_call.1} parent=39 // pred_fallthru
          _
      $region40: #{tpu_custom_call.1} parent=5 // pred_fallthru
        _
    $region6: #{tpu_custom_call.1} parent=1 // loop_footer
      %s19 = sadd.s32 1, %s15
    $region7: #{tpu_custom_call.1} parent=1 // loop_footer_branch
      %14 = sbr.rel target = $region3
    $region8: #{tpu_custom_call.1} parent=1 // loop_exit
      _
    %240 = vsyncpa [#allocation4], 1
    %s241 = scalar_lea.sflag [#allocation4], 1
    %242 = vsyncpa %s241, 1
    %243 = vsyncpa [#allocation5], 1
    %s244 = scalar_lea.sflag [#allocation5], 1
    %245 = vsyncpa %s244, 1

</llo_original>
